<compile_context>
chip_gen: v5e
topology: v5e:2x2
jax: 0.10.0
libtpu: 0.0.40
codegen_flags: <defaults>
</compile_context>

<pallas_src>
import math

import jax
import jax.numpy as jnp
from jax.experimental import pallas as pl
from jax.experimental.pallas import tpu as pltpu

D_DIM = 50   # module default d_dim
T_DIM = 64   # module's self.t_dim

_TARGET_ROWS = 2048                 # BB * N rows per grid step (amortize step overhead)
_VMEM_BUDGET = 20 * 1024 * 1024     # double-buffered working-set budget (fits v7x scoped VMEM)
_VMEM_LIMIT = 32 * 1024 * 1024      # scoped VMEM limit (<= v7x 64 MiB physical, > v5e 16 MiB default)


def _samap_kernel(q_ref, k_ref, wqt_ref, bq_ref, wkt_ref, bk_ref, o_ref):
    # q_ref, k_ref: (BB, N, D)   -- BB batch elements per grid step
    # wqt_ref, wkt_ref: (D, T)   -- pre-transposed; 1/sqrt(D) folded into Wq
    # bq_ref, bk_ref: (1, T)     -- 1/sqrt(D) folded into bq
    # o_ref: (BB, T, T)
    x_q = q_ref[...]
    x_k = k_ref[...]

    # Linear projections on the MXU; feature dim contracts directly against the
    # pre-transposed weight (no in-kernel relayout). Bias added exactly in f32.
    q = jax.lax.dot_general(
        x_q, wqt_ref[...],
        dimension_numbers=(((2,), (0,)), ((), ())),
        preferred_element_type=jnp.float32,
    ) + bq_ref[...]                       # (BB, N, T), already scaled by 1/sqrt(D)
    k = jax.lax.dot_general(
        x_k, wkt_ref[...],
        dimension_numbers=(((2,), (0,)), ((), ())),
        preferred_element_type=jnp.float32,
    ) + bk_ref[...]                       # (BB, N, T)

    # scores[b, i, j] = sum_n q[b, n, i] * k[b, n, j]  (contract seq, batch carried)
    scores = jax.lax.dot_general(
        q, k,
        dimension_numbers=(((1,), (1,)), ((0,), (0,))),
        preferred_element_type=jnp.float32,
    )                                     # (BB, T, T)

    o_ref[...] = jnp.tanh(scores).astype(o_ref.dtype)


def _choose_batch_block(B, N):
    """Batch elements per grid step.

    Take the largest BB allowed by (a) ~_TARGET_ROWS MXU/DMA rows per step and
    (b) the double-buffered VMEM budget; if B exceeds that cap, balance BB
    across the minimum number of steps so padding is (near-)zero even for
    prime/odd B.  No forced multi-step split for small B.
    """
    n_pad = -(-N // 8) * 8
    # per-BB double-buffered bytes: 2 inputs * 2 bufs * N_pad * 128 lanes * 4B
    #                             + 1 output * 2 bufs * 64 * 128 lanes * 4B
    per_bb = 2 * 2 * n_pad * 128 * 4 + 2 * T_DIM * 128 * 4
    bb_cap = max(1, min(_TARGET_ROWS // max(N, 1), _VMEM_BUDGET // per_bb))
    # TODO(synk): very large N (N_pad * 2 KiB > budget) would additionally need N-tiling.
    if B <= bb_cap:
        return B
    steps = -(-B // bb_cap)
    return -(-B // steps)


def samap_forward(query, key, wq, bq, wk, bk):
    """query, key: (B, N, D_DIM) float32. wq/wk: (T_DIM, D_DIM), bq/bk: (T_DIM,).
    Returns (B, 1, T_DIM, T_DIM)."""
    B, N, D = query.shape
    assert D == D_DIM  # TODO(synk): kernel is specialized to the module default d_dim=50

    inv_sqrt_d = 1.0 / math.sqrt(D_DIM)
    # Pre-transpose weights to (D, T); fold the attention scale into the query
    # projection (scores = (q/sqrt(D))^T k == (q^T k)/sqrt(D)).  Host-side, free.
    wqt = (wq.T * inv_sqrt_d).astype(jnp.float32)          # (D, T)
    wkt = wk.T.astype(jnp.float32)                          # (D, T)
    bq2 = (bq * inv_sqrt_d).reshape(1, T_DIM).astype(jnp.float32)
    bk2 = bk.reshape(1, T_DIM).astype(jnp.float32)

    BB = _choose_batch_block(B, N)
    steps = -(-B // BB)
    B_pad = steps * BB
    if B_pad != B:
        pad = ((0, B_pad - B), (0, 0), (0, 0))
        query = jnp.pad(query, pad)
        key = jnp.pad(key, pad)

    out = pl.pallas_call(
        _samap_kernel,
        out_shape=jax.ShapeDtypeStruct((B_pad, T_DIM, T_DIM), jnp.float32),
        grid_spec=pltpu.PrefetchScalarGridSpec(
            num_scalar_prefetch=0,
            grid=(steps,),
            in_specs=[
                pl.BlockSpec((BB, N, D), lambda b: (b, 0, 0)),      # query block
                pl.BlockSpec((BB, N, D), lambda b: (b, 0, 0)),      # key block
                pl.BlockSpec((D, T_DIM), lambda b: (0, 0)),         # Wq^T (pre-scaled)
                pl.BlockSpec((1, T_DIM), lambda b: (0, 0)),         # bq (pre-scaled)
                pl.BlockSpec((D, T_DIM), lambda b: (0, 0)),         # Wk^T
                pl.BlockSpec((1, T_DIM), lambda b: (0, 0)),         # bk
            ],
            out_specs=pl.BlockSpec((BB, T_DIM, T_DIM), lambda b: (b, 0, 0)),
        ),
        compiler_params=pltpu.CompilerParams(
            dimension_semantics=("parallel",),      # shards full-size steps across v7x's 2 TCs
            vmem_limit_bytes=_VMEM_LIMIT,
        ),
    )(query, key, wqt, bq2, wkt, bk2)

    if B_pad != B:
        out = out[:B]
    return out[:, None, :, :]   # unsqueeze(1); free layout change


def _reference(query, key, wq, bq, wk, bk):
    q = query @ wq.T + bq          # (B, N, T)
    k = key @ wk.T + bk            # (B, N, T)
    Q = jnp.transpose(q, (0, 2, 1))
    K = jnp.transpose(k, (0, 2, 1))
    s = jnp.einsum("btn,bun->btu", Q, K) / math.sqrt(D_DIM)
    return jnp.tanh(s)[:, None]


if __name__ == "__main__":
    B, N = 2, 8
    key0 = jax.random.PRNGKey(0)
    k1, k2, k3, k4, k5, k6 = jax.random.split(key0, 6)

    # Deterministic parameter init (PyTorch Linear-style uniform bound).
    bound = 1.0 / math.sqrt(D_DIM)
    wq = jax.random.uniform(k1, (T_DIM, D_DIM), jnp.float32, -bound, bound)
    bq = jax.random.uniform(k2, (T_DIM,), jnp.float32, -bound, bound)
    wk = jax.random.uniform(k3, (T_DIM, D_DIM), jnp.float32, -bound, bound)
    bk = jax.random.uniform(k4, (T_DIM,), jnp.float32, -bound, bound)

    query = jax.random.normal(k5, (B, N, D_DIM), jnp.float32)
    key = jax.random.normal(k6, (B, N, D_DIM), jnp.float32)

    out = samap_forward(query, key, wq, bq, wk, bk)
    out = jax.block_until_ready(out)

    ref = _reference(query, key, wq, bq, wk, bk)
    assert out.shape == (B, 1, T_DIM, T_DIM), out.shape
    assert jnp.allclose(out, ref, atol=1e-5, rtol=1e-5), float(jnp.max(jnp.abs(out - ref)))

    print("KERNEL_OK")
</pallas_src>

<mosaic_0001>
module attributes {stable_mosaic.version = 11 : i64} {
  func.func @_samap_kernel(%arg0: i32, %arg1: memref<2x8x50xf32, #tpu.memory_space<vmem>>, %arg2: memref<2x8x50xf32, #tpu.memory_space<vmem>>, %arg3: memref<50x64xf32, #tpu.memory_space<vmem>>, %arg4: memref<1x64xf32, #tpu.memory_space<vmem>>, %arg5: memref<50x64xf32, #tpu.memory_space<vmem>>, %arg6: memref<1x64xf32, #tpu.memory_space<vmem>>, %arg7: memref<2x64x64xf32, #tpu.memory_space<vmem>>) attributes {dimension_semantics = [#tpu.dimension_semantics<parallel>], iteration_bounds = array<i64: 1>, scalar_prefetch = 0 : i64, scratch_operands = 0 : i64, tpu.core_type = #tpu.core_type<tc>, window_params = [{transform_indices = @transform_0, window_bounds = array<i64: 2, 8, 50>}, {transform_indices = @transform_1, window_bounds = array<i64: 2, 8, 50>}, {pipeline_mode = #tpu.pipeline_mode<synchronous>, transform_indices = @transform_2, window_bounds = array<i64: 50, 64>}, {pipeline_mode = #tpu.pipeline_mode<synchronous>, transform_indices = @transform_3, window_bounds = array<i64: 1, 64>}, {pipeline_mode = #tpu.pipeline_mode<synchronous>, transform_indices = @transform_4, window_bounds = array<i64: 50, 64>}, {pipeline_mode = #tpu.pipeline_mode<synchronous>, transform_indices = @transform_5, window_bounds = array<i64: 1, 64>}, {transform_indices = @transform_6, window_bounds = array<i64: 2, 64, 64>}]} {
    %c0 = arith.constant 0 : index
    %c0_0 = arith.constant 0 : index
    %c0_1 = arith.constant 0 : index
    %0 = vector.load %arg1[%c0, %c0_0, %c0_1] : memref<2x8x50xf32, #tpu.memory_space<vmem>>, vector<2x8x50xf32>
    %c0_2 = arith.constant 0 : index
    %c0_3 = arith.constant 0 : index
    %c0_4 = arith.constant 0 : index
    %1 = vector.load %arg2[%c0_2, %c0_3, %c0_4] : memref<2x8x50xf32, #tpu.memory_space<vmem>>, vector<2x8x50xf32>
    %c0_5 = arith.constant 0 : index
    %c0_6 = arith.constant 0 : index
    %2 = vector.load %arg3[%c0_5, %c0_6] : memref<50x64xf32, #tpu.memory_space<vmem>>, vector<50x64xf32>
    %cst = arith.constant dense<0.000000e+00> : vector<2x8x64xf32>
    %3 = tpu.matmul %0, %2, %cst {dimension_numbers = #tpu.dot_dimension_numbers<[2], [0], [0, 1], [1], [0, 0, 0, 1, 1, 1], [], []>} : vector<2x8x50xf32>, vector<50x64xf32>, vector<2x8x64xf32> -> vector<2x8x64xf32>
    %c0_7 = arith.constant 0 : index
    %c0_8 = arith.constant 0 : index
    %4 = vector.load %arg4[%c0_7, %c0_8] : memref<1x64xf32, #tpu.memory_space<vmem>>, vector<1x64xf32>
    %5 = vector.shape_cast %4 : vector<1x64xf32> to vector<1x1x64xf32>
    %6 = vector.broadcast %5 : vector<1x1x64xf32> to vector<2x8x64xf32>
    %7 = arith.addf %3, %6 : vector<2x8x64xf32>
    %c0_9 = arith.constant 0 : index
    %c0_10 = arith.constant 0 : index
    %8 = vector.load %arg5[%c0_9, %c0_10] : memref<50x64xf32, #tpu.memory_space<vmem>>, vector<50x64xf32>
    %cst_11 = arith.constant dense<0.000000e+00> : vector<2x8x64xf32>
    %9 = tpu.matmul %1, %8, %cst_11 {dimension_numbers = #tpu.dot_dimension_numbers<[2], [0], [0, 1], [1], [0, 0, 0, 1, 1, 1], [], []>} : vector<2x8x50xf32>, vector<50x64xf32>, vector<2x8x64xf32> -> vector<2x8x64xf32>
    %c0_12 = arith.constant 0 : index
    %c0_13 = arith.constant 0 : index
    %10 = vector.load %arg6[%c0_12, %c0_13] : memref<1x64xf32, #tpu.memory_space<vmem>>, vector<1x64xf32>
    %11 = vector.shape_cast %10 : vector<1x64xf32> to vector<1x1x64xf32>
    %12 = vector.broadcast %11 : vector<1x1x64xf32> to vector<2x8x64xf32>
    %13 = arith.addf %9, %12 : vector<2x8x64xf32>
    %cst_14 = arith.constant dense<0.000000e+00> : vector<2x64x64xf32>
    %14 = tpu.matmul %7, %13, %cst_14 {dimension_numbers = #tpu.dot_dimension_numbers<[1], [1], [2], [2], [0, 0, 0, 2, 1, 2], [0], [0]>} : vector<2x8x64xf32>, vector<2x8x64xf32>, vector<2x64x64xf32> -> vector<2x64x64xf32>
    %15 = math.tanh %14 : vector<2x64x64xf32>
    %c0_15 = arith.constant 0 : index
    %c0_16 = arith.constant 0 : index
    %c0_17 = arith.constant 0 : index
    %16 = vector.load %arg7[%c0_15, %c0_16, %c0_17] : memref<2x64x64xf32, #tpu.memory_space<vmem>>, vector<2x64x64xf32>
    tpu.vector_store %arg7[%c0_15, %c0_16, %c0_17], %15 {strides = array<i32>} : memref<2x64x64xf32, #tpu.memory_space<vmem>>, vector<2x64x64xf32>,
    return
  }
  func.func @transform_0(%arg0: i32) -> (i32, i32, i32) {
    %c0_i32 = arith.constant 0 : i32
    %c0_i32_0 = arith.constant 0 : i32
    %c0_i32_1 = arith.constant 0 : i32
    return %arg0, %c0_i32, %c0_i32_0 : i32, i32, i32
  }
  func.func @transform_1(%arg0: i32) -> (i32, i32, i32) {
    %c0_i32 = arith.constant 0 : i32
    %c0_i32_0 = arith.constant 0 : i32
    %c0_i32_1 = arith.constant 0 : i32
    return %arg0, %c0_i32, %c0_i32_0 : i32, i32, i32
  }
  func.func @transform_2(%arg0: i32) -> (i32, i32) {
    %c0_i32 = arith.constant 0 : i32
    %c0_i32_0 = arith.constant 0 : i32
    %c0_i32_1 = arith.constant 0 : i32
    return %c0_i32, %c0_i32_0 : i32, i32
  }
  func.func @transform_3(%arg0: i32) -> (i32, i32) {
    %c0_i32 = arith.constant 0 : i32
    %c0_i32_0 = arith.constant 0 : i32
    %c0_i32_1 = arith.constant 0 : i32
    return %c0_i32, %c0_i32_0 : i32, i32
  }
  func.func @transform_4(%arg0: i32) -> (i32, i32) {
    %c0_i32 = arith.constant 0 : i32
    %c0_i32_0 = arith.constant 0 : i32
    %c0_i32_1 = arith.constant 0 : i32
    return %c0_i32, %c0_i32_0 : i32, i32
  }
  func.func @transform_5(%arg0: i32) -> (i32, i32) {
    %c0_i32 = arith.constant 0 : i32
    %c0_i32_0 = arith.constant 0 : i32
    %c0_i32_1 = arith.constant 0 : i32
    return %c0_i32, %c0_i32_0 : i32, i32
  }
  func.func @transform_6(%arg0: i32) -> (i32, i32, i32) {
    %c0_i32 = arith.constant 0 : i32
    %c0_i32_0 = arith.constant 0 : i32
    %c0_i32_1 = arith.constant 0 : i32
    return %arg0, %c0_i32, %c0_i32_0 : i32, i32, i32
  }
}

</mosaic_0001>

<llo_original>
// kernel: tpu_custom_call.1
$region0: #{tpu_custom_call.1}
  #allocation0 [shape = 'u32[]', space=smem, size = 0x4, offset = 0x4, fixed_abs, tag = 'smem constant byte address 0x4 - core index']
  #allocation1 [shape = 'u32[72,128]{1,0:T(1,128)}', space=vmem, size = 0x9000, scoped, tag = 'internal scratch']
  %s0 = inlined_call_operand.hbm [shape: f32[2,8,50], index: 0, kind: input, shape index: {}]
  %s1 = inlined_call_operand.hbm [shape: f32[2,8,50], index: 1, kind: input, shape index: {}]
  %s2 = inlined_call_operand.hbm [shape: f32[50,64], index: 2, kind: input, shape index: {}]
  %s3 = inlined_call_operand.vmem [shape: f32[1,64], index: 3, kind: input, shape index: {}]
  %s4 = inlined_call_operand.hbm [shape: f32[50,64], index: 4, kind: input, shape index: {}]
  %s5 = inlined_call_operand.vmem [shape: f32[1,64], index: 5, kind: input, shape index: {}]
  %s6 = inlined_call_operand.hbm [shape: f32[2,64,64], index: 6, kind: output, shape index: {}]
  %s7 = sld [smem:[#allocation0]]
  $region50: #{tpu_custom_call.1} parent=0
    _
  %s9 = ssub.s32 1, %s7
  %s10 = scalar_select 0, %s9, %s7
  $region1: #{tpu_custom_call.1} parent=0
    #allocation2 [shape = 'u8[8192]{0}', space=vmem, size = 0x2000, scoped, tag = 'input window, operand 0, single buffered']
    #allocation3 [shape = 's32[1]{0}', space=sflag, size = 0x4, scoped, tag = 'scoped memory for tpu_custom_call.1']
    #allocation4 [shape = 's32[1]{0}', space=sflag, size = 0x4, scoped, tag = 'scoped memory for tpu_custom_call.1']
    #allocation5 [shape = 'u8[8192]{0}', space=vmem, size = 0x2000, scoped, tag = 'input window, operand 1, single buffered']
    #allocation6 [shape = 's32[1]{0}', space=sflag, size = 0x4, scoped, tag = 'scoped memory for tpu_custom_call.1']
    #allocation7 [shape = 'u8[28672]{0}', space=vmem, size = 0x7000, scoped, tag = 'input window, operand 2, single buffered']
    #allocation8 [shape = 'u8[28672]{0}', space=vmem, size = 0x7000, scoped, tag = 'input window, operand 4, single buffered']
    #allocation9 [shape = 's32[1]{0}', space=sflag, size = 0x4, scoped, tag = 'scoped memory for tpu_custom_call.1']
    #allocation10 [shape = 'u8[65536]{0}', space=vmem, size = 0x10000, scoped, tag = 'output window, operand 0, single buffered']
    %11 = vsyncpa [#allocation3], 0
    %12 = vsyncpa [#allocation6], 0
    %13 = vsyncpa [#allocation9], 0
    %14 = vsyncpa [#allocation4], 0
    // Predicated region
    $region2: #{tpu_custom_call.1} parent=1 // pred_check
      _
    $region3: #{tpu_custom_call.1} parent=1 // pred_check_branch
      %16 = sbr.rel (0) target = $region5
    $region4: #{tpu_custom_call.1} parent=1 // pred_region
      %18 = vsyncadd [#allocation3], 0
      %s19 = sshll.u32 %s0, 4
      %s20 = int_to_ptr.hbm [resolvable:$true] %s19
      %s21 = sshll.u32 [#allocation2], 4
      %s22 = int_to_ptr.vmem [resolvable:$true] %s21
      %27 = dma.hbm_to_vmem [thread:$0]  %s20, 256, %s22, [#allocation3], 128, 128, 8
    $region5: #{tpu_custom_call.1} parent=1 // pred_fallthru
      _
    // Predicated region
    $region6: #{tpu_custom_call.1} parent=1 // pred_check
      _
    $region7: #{tpu_custom_call.1} parent=1 // pred_check_branch
      %29 = sbr.rel (0) target = $region9
    $region8: #{tpu_custom_call.1} parent=1 // pred_region
      %31 = vsyncadd [#allocation6], 0
      %s32 = sshll.u32 %s1, 4
      %s33 = int_to_ptr.hbm [resolvable:$true] %s32
      %s34 = sshll.u32 [#allocation5], 4
      %s35 = int_to_ptr.vmem [resolvable:$true] %s34
      %40 = dma.hbm_to_vmem [thread:$0]  %s33, 256, %s35, [#allocation6], 128, 128, 8
    $region9: #{tpu_custom_call.1} parent=1 // pred_fallthru
      _
    // Predicated region
    $region10: #{tpu_custom_call.1} parent=1 // pred_check
      _
    $region11: #{tpu_custom_call.1} parent=1 // pred_check_branch
      %42 = sbr.rel (0) target = $region13
    $region12: #{tpu_custom_call.1} parent=1 // pred_region
      %44 = vsyncadd [#allocation6], 0
      %s45 = sshll.u32 %s2, 4
      %s46 = int_to_ptr.hbm [resolvable:$true] %s45
      %s47 = sshll.u32 [#allocation7], 4
      %s48 = int_to_ptr.vmem [resolvable:$true] %s47
      %53 = dma.hbm_to_vmem [thread:$0]  %s46, 896, %s48, [#allocation6], 128, 128, 8
    $region13: #{tpu_custom_call.1} parent=1 // pred_fallthru
      _
    // Predicated region
    $region14: #{tpu_custom_call.1} parent=1 // pred_check
      _
    $region15: #{tpu_custom_call.1} parent=1 // pred_check_branch
      %55 = sbr.rel (0) target = $region17
    $region16: #{tpu_custom_call.1} parent=1 // pred_region
      _
    $region17: #{tpu_custom_call.1} parent=1 // pred_fallthru
      _
    // Predicated region
    $region18: #{tpu_custom_call.1} parent=1 // pred_check
      _
    $region19: #{tpu_custom_call.1} parent=1 // pred_check_branch
      %57 = sbr.rel (0) target = $region21
    $region20: #{tpu_custom_call.1} parent=1 // pred_region
      %59 = vsyncadd [#allocation9], 0
      %s60 = sshll.u32 %s4, 4
      %s61 = int_to_ptr.hbm [resolvable:$true] %s60
      %s62 = sshll.u32 [#allocation8], 4
      %s63 = int_to_ptr.vmem [resolvable:$true] %s62
      %68 = dma.hbm_to_vmem [thread:$0]  %s61, 896, %s63, [#allocation9], 128, 128, 8
    $region21: #{tpu_custom_call.1} parent=1 // pred_fallthru
      _
    // Predicated region
    $region22: #{tpu_custom_call.1} parent=1 // pred_check
      _
    $region23: #{tpu_custom_call.1} parent=1 // pred_check_branch
      %70 = sbr.rel (0) target = $region25
    $region24: #{tpu_custom_call.1} parent=1 // pred_region
      _
    $region25: #{tpu_custom_call.1} parent=1 // pred_fallthru
      _
    // Predicated region
    $region26: #{tpu_custom_call.1} parent=1 // pred_check
      _
    $region27: #{tpu_custom_call.1} parent=1 // pred_check_branch
      %72 = sbr.rel (0) target = $region29
    $region28: #{tpu_custom_call.1} parent=1 // pred_region
      %74 = dma.done [#allocation3], 256
    $region29: #{tpu_custom_call.1} parent=1 // pred_fallthru
      _
    // Predicated region
    $region30: #{tpu_custom_call.1} parent=1 // pred_check
      _
    $region31: #{tpu_custom_call.1} parent=1 // pred_check_branch
      %76 = sbr.rel (0) target = $region33
    $region32: #{tpu_custom_call.1} parent=1 // pred_region
      %78 = dma.done [#allocation6], 256
    $region33: #{tpu_custom_call.1} parent=1 // pred_fallthru
      _
    // Predicated region
    $region34: #{tpu_custom_call.1} parent=1 // pred_check
      _
    $region35: #{tpu_custom_call.1} parent=1 // pred_check_branch
      %80 = sbr.rel (0) target = $region37
    $region36: #{tpu_custom_call.1} parent=1 // pred_region
      %82 = dma.done [#allocation6], 896
    $region37: #{tpu_custom_call.1} parent=1 // pred_fallthru
      _
    // Predicated region
    $region38: #{tpu_custom_call.1} parent=1 // pred_check
      _
    $region39: #{tpu_custom_call.1} parent=1 // pred_check_branch
      %84 = sbr.rel (0) target = $region41
    $region40: #{tpu_custom_call.1} parent=1 // pred_region
      %86 = dma.done [#allocation9], 896
    $region41: #{tpu_custom_call.1} parent=1 // pred_fallthru
      _
    %v87 = vld [vmem:[#allocation2] sm:$0xff]
    %v88 = vld [vmem:[#allocation2 + $0x8] sm:$0xff]
    %v89 = vld [vmem:[#allocation5] sm:$0xff]
    %v90 = vld [vmem:[#allocation5 + $0x8] sm:$0xff]
    %v91 = vld [vmem:[#allocation7] sm:$0xff]
    %v92 = vld [vmem:[#allocation7 + $0x8] sm:$0xff]
    %v93 = vld [vmem:[#allocation7 + $0x10] sm:$0xff]
    %v94 = vld [vmem:[#allocation7 + $0x18] sm:$0xff]
    %v95 = vld [vmem:[#allocation7 + $0x20] sm:$0xff]
    %v96 = vld [vmem:[#allocation7 + $0x28] sm:$0xff]
    %v97 = vld [vmem:[#allocation7 + $0x30] sm:$0x3]
    %v98 = vld [vmem:[%s3] sm:$0x1]
    %v100 = vperm.slane %v98, 0
    %vm102 = vcmask 408576
    %v104 = vsel %vm102, %v87, 0
    %v107 = vsel %vm102, %v88, 0
    %vm109 = vcmask 1041408
    %v111 = vsel %vm109, %v97, 0
    %113 = vmatpush.msra.mxu0 0.0
    %114 = vmatpush.msra.mxu0 0.0
    %115 = vmatpush.msra.mxu0 0.0
    %116 = vmatpush.msra.mxu0 0.0
    %117 = vmatpush.msra.mxu0 0.0
    %118 = vmatpush.msra.mxu0 0.0
    %119 = vmatpush.msra.mxu0 0.0
    %120 = vmatpush.msra.mxu0 0.0
    %121 = vmatpush.msra.mxu0 0.0
    %122 = vmatpush.msra.mxu0 %v111
    %123 = vmatpush.msra.mxu0 %v96
    %124 = vmatpush.msra.mxu0 %v95
    %125 = vmatpush.msra.mxu0 %v94
    %126 = vmatpush.msra.mxu0 %v93
    %127 = vmatpush.msra.mxu0 %v92
    %128 = vmatpush.msra.mxu0 %v91
    %129 = vmatmul.f32.gmra.mxu0 %v104
    %v130 = vpop.f32.mrf.mxu0
    %v131 = vadd.f32 %v100, %v130
    %132 = vmatmul.f32.gmra.mxu0 %v107
    %v133 = vpop.f32.mrf.mxu0
    %v134 = vadd.f32 %v100, %v133
    %135 = vdwg.mxu0
    %v136 = vld [vmem:[#allocation8] sm:$0xff]
    %v137 = vld [vmem:[#allocation8 + $0x8] sm:$0xff]
    %v138 = vld [vmem:[#allocation8 + $0x10] sm:$0xff]
    %v139 = vld [vmem:[#allocation8 + $0x18] sm:$0xff]
    %v140 = vld [vmem:[#allocation8 + $0x20] sm:$0xff]
    %v141 = vld [vmem:[#allocation8 + $0x28] sm:$0xff]
    %v142 = vld [vmem:[#allocation8 + $0x30] sm:$0x3]
    %v143 = vld [vmem:[%s5] sm:$0x1]
    %v145 = vperm.slane %v143, 0
    %v148 = vsel %vm102, %v89, 0
    %v151 = vsel %vm102, %v90, 0
    %v154 = vsel %vm109, %v142, 0
    %156 = vmatpush.msra.mxu0 0.0
    %157 = vmatpush.msra.mxu0 0.0
    %158 = vmatpush.msra.mxu0 0.0
    %159 = vmatpush.msra.mxu0 0.0
    %160 = vmatpush.msra.mxu0 0.0
    %161 = vmatpush.msra.mxu0 0.0
    %162 = vmatpush.msra.mxu0 0.0
    %163 = vmatpush.msra.mxu0 0.0
    %164 = vmatpush.msra.mxu0 0.0
    %165 = vmatpush.msra.mxu0 %v154
    %166 = vmatpush.msra.mxu0 %v141
    %167 = vmatpush.msra.mxu0 %v140
    %168 = vmatpush.msra.mxu0 %v139
    %169 = vmatpush.msra.mxu0 %v138
    %170 = vmatpush.msra.mxu0 %v137
    %171 = vmatpush.msra.mxu0 %v136
    %172 = vmatmul.f32.gmra.mxu0 %v148
    %v173 = vpop.f32.mrf.mxu0
    %v174 = vadd.f32 %v145, %v173
    %175 = vmatmul.f32.gmra.mxu0 %v151
    %v176 = vpop.f32.mrf.mxu0
    %v177 = vadd.f32 %v145, %v176
    %178 = vdwg.mxu0
    %179 = vxpose.xlu0.b32.start [1/16] %v131, 128
    %180 = vxpose.xlu0.b32.cont [2/16] 0.0, 128
    %181 = vxpose.xlu0.b32.cont [3/16] 0.0, 128
    %182 = vxpose.xlu0.b32.cont [4/16] 0.0, 128
    %183 = vxpose.xlu0.b32.cont [5/16] 0.0, 128
    %184 = vxpose.xlu0.b32.cont [6/16] 0.0, 128
    %185 = vxpose.xlu0.b32.cont [7/16] 0.0, 128
    %186 = vxpose.xlu0.b32.cont [8/16] 0.0, 128
    %187 = vxpose.xlu0.b32.cont [9/16] 0.0, 128
    %188 = vxpose.xlu0.b32.cont [10/16] 0.0, 128
    %189 = vxpose.xlu0.b32.cont [11/16] 0.0, 128
    %190 = vxpose.xlu0.b32.cont [12/16] 0.0, 128
    %191 = vxpose.xlu0.b32.cont [13/16] 0.0, 128
    %192 = vxpose.xlu0.b32.cont [14/16] 0.0, 128
    %193 = vxpose.xlu0.b32.cont [15/16] 0.0, 128
    %194 = vxpose.xlu0.b32.end [16/16] 0.0, 128
    %v195 = vpop.trf.xlu0
    %v196 = vpop.trf.xlu0
    %v197 = vpop.trf.xlu0
    %v198 = vpop.trf.xlu0
    %v199 = vpop.trf.xlu0
    %v200 = vpop.trf.xlu0
    %v201 = vpop.trf.xlu0
    %v202 = vpop.trf.xlu0
    %v203 = vpop.trf.xlu0
    %v204 = vpop.trf.xlu0
    %v205 = vpop.trf.xlu0
    %v206 = vpop.trf.xlu0
    %v207 = vpop.trf.xlu0
    %v208 = vpop.trf.xlu0
    %v209 = vpop.trf.xlu0
    %v210 = vpop.trf.xlu0
    %vm211 = vcmask 64512
    %v213 = vsel %vm211, %v195, 0
    %v216 = vsel %vm211, %v196, 0
    %v219 = vsel %vm211, %v197, 0
    %v222 = vsel %vm211, %v198, 0
    %v225 = vsel %vm211, %v199, 0
    %v228 = vsel %vm211, %v200, 0
    %v231 = vsel %vm211, %v201, 0
    %v234 = vsel %vm211, %v202, 0
    %236 = vmatpush.msra.mxu0 0.0
    %237 = vmatpush.msra.mxu0 0.0
    %238 = vmatpush.msra.mxu0 0.0
    %239 = vmatpush.msra.mxu0 0.0
    %240 = vmatpush.msra.mxu0 0.0
    %241 = vmatpush.msra.mxu0 0.0
    %242 = vmatpush.msra.mxu0 0.0
    %243 = vmatpush.msra.mxu0 0.0
    %244 = vmatpush.msra.mxu0 0.0
    %245 = vmatpush.msra.mxu0 0.0
    %246 = vmatpush.msra.mxu0 0.0
    %247 = vmatpush.msra.mxu0 0.0
    %248 = vmatpush.msra.mxu0 0.0
    %249 = vmatpush.msra.mxu0 0.0
    %250 = vmatpush.msra.mxu0 0.0
    %251 = vmatpush.msra.mxu0 %v174
    %252 = vmatmul.f32.gmra.mxu0 %v213
    %v253 = vpop.f32.mrf.mxu0
    %v254 = vadd.f32 0.0, %v253
    %255 = vmatmul.f32.gmra.mxu0 %v216
    %v256 = vpop.f32.mrf.mxu0
    %v257 = vadd.f32 0.0, %v256
    %258 = vmatmul.f32.gmra.mxu0 %v219
    %v259 = vpop.f32.mrf.mxu0
    %v260 = vadd.f32 0.0, %v259
    %261 = vmatmul.f32.gmra.mxu0 %v222
    %v262 = vpop.f32.mrf.mxu0
    %v263 = vadd.f32 0.0, %v262
    %264 = vmatmul.f32.gmra.mxu0 %v225
    %v265 = vpop.f32.mrf.mxu0
    %v266 = vadd.f32 0.0, %v265
    %267 = vmatmul.f32.gmra.mxu0 %v228
    %v268 = vpop.f32.mrf.mxu0
    %v269 = vadd.f32 0.0, %v268
    %270 = vmatmul.f32.gmra.mxu0 %v231
    %v271 = vpop.f32.mrf.mxu0
    %v272 = vadd.f32 0.0, %v271
    %273 = vmatmul.f32.gmra.mxu0 %v234
    %v274 = vpop.f32.mrf.mxu0
    %v275 = vadd.f32 0.0, %v274
    %276 = vdwg.mxu0
    %277 = vxpose.xlu0.b32.start [1/16] %v134, 128
    %278 = vxpose.xlu0.b32.cont [2/16] 0.0, 128
    %279 = vxpose.xlu0.b32.cont [3/16] 0.0, 128
    %280 = vxpose.xlu0.b32.cont [4/16] 0.0, 128
    %281 = vxpose.xlu0.b32.cont [5/16] 0.0, 128
    %282 = vxpose.xlu0.b32.cont [6/16] 0.0, 128
    %283 = vxpose.xlu0.b32.cont [7/16] 0.0, 128
    %284 = vxpose.xlu0.b32.cont [8/16] 0.0, 128
    %285 = vxpose.xlu0.b32.cont [9/16] 0.0, 128
    %286 = vxpose.xlu0.b32.cont [10/16] 0.0, 128
    %287 = vxpose.xlu0.b32.cont [11/16] 0.0, 128
    %288 = vxpose.xlu0.b32.cont [12/16] 0.0, 128
    %289 = vxpose.xlu0.b32.cont [13/16] 0.0, 128
    %290 = vxpose.xlu0.b32.cont [14/16] 0.0, 128
    %291 = vxpose.xlu0.b32.cont [15/16] 0.0, 128
    %292 = vxpose.xlu0.b32.end [16/16] 0.0, 128
    %v293 = vpop.trf.xlu0
    %v294 = vpop.trf.xlu0
    %v295 = vpop.trf.xlu0
    %v296 = vpop.trf.xlu0
    %v297 = vpop.trf.xlu0
    %v298 = vpop.trf.xlu0
    %v299 = vpop.trf.xlu0
    %v300 = vpop.trf.xlu0
    %v301 = vpop.trf.xlu0
    %v302 = vpop.trf.xlu0
    %v303 = vpop.trf.xlu0
    %v304 = vpop.trf.xlu0
    %v305 = vpop.trf.xlu0
    %v306 = vpop.trf.xlu0
    %v307 = vpop.trf.xlu0
    %v308 = vpop.trf.xlu0
    %v310 = vsel %vm211, %v293, 0
    %v313 = vsel %vm211, %v294, 0
    %v316 = vsel %vm211, %v295, 0
    %v319 = vsel %vm211, %v296, 0
    %v322 = vsel %vm211, %v297, 0
    %v325 = vsel %vm211, %v298, 0
    %v328 = vsel %vm211, %v299, 0
    %v331 = vsel %vm211, %v300, 0
    %333 = vmatpush.msra.mxu0 0.0
    %334 = vmatpush.msra.mxu0 0.0
    %335 = vmatpush.msra.mxu0 0.0
    %336 = vmatpush.msra.mxu0 0.0
    %337 = vmatpush.msra.mxu0 0.0
    %338 = vmatpush.msra.mxu0 0.0
    %339 = vmatpush.msra.mxu0 0.0
    %340 = vmatpush.msra.mxu0 0.0
    %341 = vmatpush.msra.mxu0 0.0
    %342 = vmatpush.msra.mxu0 0.0
    %343 = vmatpush.msra.mxu0 0.0
    %344 = vmatpush.msra.mxu0 0.0
    %345 = vmatpush.msra.mxu0 0.0
    %346 = vmatpush.msra.mxu0 0.0
    %347 = vmatpush.msra.mxu0 0.0
    %348 = vmatpush.msra.mxu0 %v177
    %349 = vmatmul.f32.gmra.mxu0 %v310
    %v350 = vpop.f32.mrf.mxu0
    %v351 = vadd.f32 0.0, %v350
    %352 = vmatmul.f32.gmra.mxu0 %v313
    %v353 = vpop.f32.mrf.mxu0
    %v354 = vadd.f32 0.0, %v353
    %355 = vmatmul.f32.gmra.mxu0 %v316
    %v356 = vpop.f32.mrf.mxu0
    %v357 = vadd.f32 0.0, %v356
    %358 = vmatmul.f32.gmra.mxu0 %v319
    %v359 = vpop.f32.mrf.mxu0
    %v360 = vadd.f32 0.0, %v359
    %361 = vmatmul.f32.gmra.mxu0 %v322
    %v362 = vpop.f32.mrf.mxu0
    %v363 = vadd.f32 0.0, %v362
    %364 = vmatmul.f32.gmra.mxu0 %v325
    %v365 = vpop.f32.mrf.mxu0
    %v366 = vadd.f32 0.0, %v365
    %367 = vmatmul.f32.gmra.mxu0 %v328
    %v368 = vpop.f32.mrf.mxu0
    %v369 = vadd.f32 0.0, %v368
    %370 = vmatmul.f32.gmra.mxu0 %v331
    %v371 = vpop.f32.mrf.mxu0
    %v372 = vadd.f32 0.0, %v371
    %373 = vdwg.mxu0
    %v374 = vtanh.pop %v254
    %v375 = vtanh.pop %v257
    %v376 = vtanh.pop %v260
    %v377 = vtanh.pop %v263
    %v378 = vtanh.pop %v266
    %v379 = vtanh.pop %v269
    %v380 = vtanh.pop %v272
    %v381 = vtanh.pop %v275
    %v382 = vtanh.pop %v351
    %v383 = vtanh.pop %v354
    %v384 = vtanh.pop %v357
    %v385 = vtanh.pop %v360
    %v386 = vtanh.pop %v363
    %v387 = vtanh.pop %v366
    %v388 = vtanh.pop %v369
    %v389 = vtanh.pop %v372
    %vm390 = vcmask 523264
    %391 = vst.msk [vmem:[#allocation10] sm:$0xff] %vm390, %v374
    %392 = vst.msk [vmem:[#allocation10 + $0x8] sm:$0xff] %vm390, %v375
    %393 = vst.msk [vmem:[#allocation10 + $0x10] sm:$0xff] %vm390, %v376
    %394 = vst.msk [vmem:[#allocation10 + $0x18] sm:$0xff] %vm390, %v377
    %395 = vst.msk [vmem:[#allocation10 + $0x20] sm:$0xff] %vm390, %v378
    %396 = vst.msk [vmem:[#allocation10 + $0x28] sm:$0xff] %vm390, %v379
    %397 = vst.msk [vmem:[#allocation10 + $0x30] sm:$0xff] %vm390, %v380
    %398 = vst.msk [vmem:[#allocation10 + $0x38] sm:$0xff] %vm390, %v381
    %399 = vst.msk [vmem:[#allocation10 + $0x40] sm:$0xff] %vm390, %v382
    %400 = vst.msk [vmem:[#allocation10 + $0x48] sm:$0xff] %vm390, %v383
    %401 = vst.msk [vmem:[#allocation10 + $0x50] sm:$0xff] %vm390, %v384
    %402 = vst.msk [vmem:[#allocation10 + $0x58] sm:$0xff] %vm390, %v385
    %403 = vst.msk [vmem:[#allocation10 + $0x60] sm:$0xff] %vm390, %v386
    %404 = vst.msk [vmem:[#allocation10 + $0x68] sm:$0xff] %vm390, %v387
    %405 = vst.msk [vmem:[#allocation10 + $0x70] sm:$0xff] %vm390, %v388
    %406 = vst.msk [vmem:[#allocation10 + $0x78] sm:$0xff] %vm390, %v389
    // Predicated region
    $region42: #{tpu_custom_call.1} parent=1 // pred_check
      _
    $region43: #{tpu_custom_call.1} parent=1 // pred_check_branch
      %408 = sbr.rel (0) target = $region45
    $region44: #{tpu_custom_call.1} parent=1 // pred_region
      %410 = vsyncadd [#allocation4], 0
      %s411 = sshll.u32 [#allocation10], 4
      %s412 = int_to_ptr.vmem [resolvable:$true] %s411
      %s413 = sshll.u32 %s6, 4
      %s414 = int_to_ptr.hbm [resolvable:$true] %s413
      %419 = dma.vmem_to_hbm [thread:$0]  %s412, 2048, %s414, [#allocation4], 128, 128, 8
    $region45: #{tpu_custom_call.1} parent=1 // pred_fallthru
      _
    // Predicated region
    $region46: #{tpu_custom_call.1} parent=1 // pred_check
      _
    $region47: #{tpu_custom_call.1} parent=1 // pred_check_branch
      %421 = sbr.rel (0) target = $region49
    $region48: #{tpu_custom_call.1} parent=1 // pred_region
      %423 = dma.done [#allocation4], 2048
    $region49: #{tpu_custom_call.1} parent=1 // pred_fallthru
      _
    %424 = vsyncpa [#allocation3], 1
    %425 = vsyncpa [#allocation6], 1
    %426 = vsyncpa [#allocation9], 1
    %427 = vsyncpa [#allocation4], 1

</llo_original>
